<compile_context>
chip_gen: v7x
topology: tpu7x:2x2x1
jax: 0.10.0
libtpu: 0.0.40
codegen_flags: <defaults>
</compile_context>

<pallas_src>
import functools

import jax
import jax.numpy as jnp
from jax.experimental import pallas as pl
from jax.experimental.pallas import tpu as pltpu


def _round_up(x, m):
    return (x + m - 1) // m * m


def resnet_encoder_kernel(x_ref, w_in_ref, b_in_ref, w1_ref, w2_ref, b12_ref,
                          out_ref, act_ref):
    """One (batch_tile, layer) grid step.

    act_ref: resident (TB, H) f32 scratch carrying the activation across the
    layer grid axis for the current batch tile.
    """
    l = pl.program_id(1)
    w_dtype = w1_ref.dtype  # matmul input dtype (f32 or bf16), f32 accumulate.

    # input_layer: Linear(in_dim -> hidden_dim), only on the first layer step.
    @pl.when(l == 0)
    def _init():
        act_ref[...] = (
            jnp.dot(x_ref[...].astype(w_dtype), w_in_ref[...],
                    preferred_element_type=jnp.float32)
            + b_in_ref[...].astype(jnp.float32))

    residual = act_ref[...]                                   # (TB, H) f32
    b1 = b12_ref[0, 0:1, :].astype(jnp.float32)               # (1, H)
    b2 = b12_ref[0, 1:2, :].astype(jnp.float32)               # (1, H)

    # residual block: Linear -> ReLU -> Linear, + residual, ReLU
    h = jnp.dot(residual.astype(w_dtype), w1_ref[0],
                preferred_element_type=jnp.float32) + b1
    h = jnp.maximum(h, 0.0)
    h = jnp.dot(h.astype(w_dtype), w2_ref[0],
                preferred_element_type=jnp.float32) + b2
    act = jnp.maximum(h + residual, 0.0)
    act_ref[...] = act

    @pl.when(l == pl.num_programs(1) - 1)
    def _write():
        out_ref[...] = act.astype(out_ref.dtype)


def resnet_encoder_pallas(x, params, num_layers, *, block_b=128,
                          weights_dtype=jnp.float32):
    """x: (B, in_dim) f32.  params: dict from init_params (weights stored as
    (in_features, out_features), i.e. transposed vs. PyTorch)."""
    assert num_layers >= 1
    B, D = x.shape
    H = params["w_in"].shape[1]
    L = num_layers

    # Pad everything to MXU/lane-friendly 128 multiples (zero padding is exact).
    D_pad = _round_up(D, 128)
    H_pad = _round_up(H, 128)
    B_pad = _round_up(B, block_b)
    TB = block_b

    wdt = weights_dtype
    x_p = jnp.zeros((B_pad, D_pad), jnp.float32).at[:B, :D].set(x)
    w_in = jnp.zeros((D_pad, H_pad), wdt).at[:D, :H].set(
        params["w_in"].astype(wdt))
    b_in = jnp.zeros((1, H_pad), wdt).at[:, :H].set(params["b_in"].astype(wdt))
    w1 = jnp.zeros((L, H_pad, H_pad), wdt).at[:, :H, :H].set(
        params["w1"].astype(wdt))
    w2 = jnp.zeros((L, H_pad, H_pad), wdt).at[:, :H, :H].set(
        params["w2"].astype(wdt))
    # Stack the two per-layer biases into one (L, 2, H_pad) array (fewer DMAs).
    b12 = jnp.zeros((L, 2, H_pad), wdt)
    b12 = b12.at[:, 0, :H].set(params["b1"][:, 0, :].astype(wdt))
    b12 = b12.at[:, 1, :H].set(params["b2"][:, 0, :].astype(wdt))

    grid = (B_pad // TB, L)

    # Explicit VMEM budget: double-buffered input tiles + resident output +
    # activation scratch, with margin.  Keeps us honest on v7x's 64 MiB VMEM.
    wsize = jnp.dtype(wdt).itemsize
    tile_bytes = (TB * D_pad * 4                      # x tile
                  + D_pad * H_pad * wsize             # w_in
                  + H_pad * wsize                     # b_in
                  + 2 * H_pad * H_pad * wsize         # w1 + w2 (one layer)
                  + 2 * H_pad * wsize                 # b12 (one layer)
                  + TB * H_pad * 4)                   # output tile
    vmem_limit = min(int(2 * tile_bytes * 1.5) + TB * H_pad * 4 + (1 << 20),
                     100 * (1 << 20))

    flops = 2 * B_pad * D_pad * H_pad + L * 2 * (2 * B_pad * H_pad * H_pad)
    bytes_accessed = (x_p.size * 4 + (w_in.size + b_in.size + w1.size
                                      + w2.size + b12.size) * wsize
                      + B_pad * H_pad * 4)

    out = pl.pallas_call(
        resnet_encoder_kernel,
        out_shape=jax.ShapeDtypeStruct((B_pad, H_pad), jnp.float32),
        grid_spec=pltpu.PrefetchScalarGridSpec(
            num_scalar_prefetch=0,
            grid=grid,
            in_specs=[
                pl.BlockSpec((TB, D_pad), lambda b, l: (b, 0)),        # x
                pl.BlockSpec((D_pad, H_pad), lambda b, l: (0, 0)),     # w_in
                pl.BlockSpec((1, H_pad), lambda b, l: (0, 0)),         # b_in
                pl.BlockSpec((1, H_pad, H_pad), lambda b, l: (l, 0, 0)),  # w1[l]
                pl.BlockSpec((1, H_pad, H_pad), lambda b, l: (l, 0, 0)),  # w2[l]
                pl.BlockSpec((1, 2, H_pad), lambda b, l: (l, 0, 0)),      # b1/b2[l]
            ],
            out_specs=pl.BlockSpec((TB, H_pad), lambda b, l: (b, 0)),
            scratch_shapes=[pltpu.VMEM((TB, H_pad), jnp.float32)],
        ),
        compiler_params=pltpu.CompilerParams(
            dimension_semantics=("parallel", "arbitrary"),
            vmem_limit_bytes=vmem_limit),
        cost_estimate=pl.CostEstimate(flops=flops, transcendentals=0,
                                      bytes_accessed=bytes_accessed),
    )(x_p, w_in, b_in, w1, w2, b12)

    return out[:B, :H]


def resnet_encoder_ref(x, params, num_layers):
    """Pure-JAX reference with identical semantics (for validation)."""
    out = x @ params["w_in"] + params["b_in"]
    for l in range(num_layers):
        residual = out
        h = jnp.maximum(out @ params["w1"][l] + params["b1"][l], 0.0)
        h = h @ params["w2"][l] + params["b2"][l]
        out = jnp.maximum(h + residual, 0.0)
    return out


def init_params(key, in_dim, hidden_dim, num_layers):
    """PyTorch-style uniform init U(-1/sqrt(fan_in), 1/sqrt(fan_in)).
    Weights stored as (in_features, out_features)."""
    keys = jax.random.split(key, 2 + 4 * num_layers)

    def lin(k, fan_in, shape):
        bound = 1.0 / jnp.sqrt(fan_in)
        return jax.random.uniform(k, shape, jnp.float32, -bound, bound)

    w_in = lin(keys[0], in_dim, (in_dim, hidden_dim))
    b_in = lin(keys[1], in_dim, (1, hidden_dim))
    w1 = jnp.stack([lin(keys[2 + 4 * l + 0], hidden_dim, (hidden_dim, hidden_dim))
                    for l in range(num_layers)])
    b1 = jnp.stack([lin(keys[2 + 4 * l + 1], hidden_dim, (1, hidden_dim))
                    for l in range(num_layers)])
    w2 = jnp.stack([lin(keys[2 + 4 * l + 2], hidden_dim, (hidden_dim, hidden_dim))
                    for l in range(num_layers)])
    b2 = jnp.stack([lin(keys[2 + 4 * l + 3], hidden_dim, (1, hidden_dim))
                    for l in range(num_layers)])
    return {"w_in": w_in, "b_in": b_in, "w1": w1, "b1": b1, "w2": w2, "b2": b2}


if __name__ == "__main__":
    in_dim, hidden_dim, num_layers = 16, 32, 3
    batch = 8

    key = jax.random.PRNGKey(0)
    k_x, k_p = jax.random.split(key)
    x = jax.random.normal(k_x, (batch, in_dim), jnp.float32)
    params = init_params(k_p, in_dim, hidden_dim, num_layers)

    ref = resnet_encoder_ref(x, params, num_layers)

    # f32 weight path (exact vs reference).
    out = resnet_encoder_pallas(x, params, num_layers)
    out = jax.block_until_ready(out)
    assert out.shape == (batch, hidden_dim)
    assert jnp.allclose(out, ref, atol=1e-5, rtol=1e-5), "f32 mismatch vs reference"

    # bf16 weight-streaming path (v6e/v7x MXU optimization), loose tolerance.
    out_bf16 = resnet_encoder_pallas(x, params, num_layers,
                                     weights_dtype=jnp.bfloat16)
    out_bf16 = jax.block_until_ready(out_bf16)
    assert jnp.allclose(out_bf16, ref, atol=5e-2, rtol=5e-2), "bf16 mismatch vs reference"

    print("KERNEL_OK")
</pallas_src>

<mosaic_0001>
module attributes {stable_mosaic.version = 11 : i64} {
  func.func @resnet_encoder_kernel(%arg0: i32, %arg1: i32, %arg2: memref<128x128xf32, #tpu.memory_space<vmem>>, %arg3: memref<128x128xf32, #tpu.memory_space<vmem>>, %arg4: memref<1x128xf32, #tpu.memory_space<vmem>>, %arg5: memref<1x128x128xf32, #tpu.memory_space<vmem>>, %arg6: memref<1x128x128xf32, #tpu.memory_space<vmem>>, %arg7: memref<1x2x128xf32, #tpu.memory_space<vmem>>, %arg8: memref<128x128xf32, #tpu.memory_space<vmem>>, %arg9: memref<128x128xf32, #tpu.memory_space<vmem>>) attributes {dimension_semantics = [#tpu.dimension_semantics<parallel>, #tpu.dimension_semantics<arbitrary>], iteration_bounds = array<i64: 1, 3>, scalar_prefetch = 0 : i64, scratch_operands = 1 : i64, tpu.core_type = #tpu.core_type<tc>, window_params = [{transform_indices = @transform_0, window_bounds = array<i64: 128, 128>}, {pipeline_mode = #tpu.pipeline_mode<synchronous>, transform_indices = @transform_1, window_bounds = array<i64: 128, 128>}, {pipeline_mode = #tpu.pipeline_mode<synchronous>, transform_indices = @transform_2, window_bounds = array<i64: 1, 128>}, {transform_indices = @transform_3, window_bounds = array<i64: 1, 128, 128>}, {transform_indices = @transform_4, window_bounds = array<i64: 1, 128, 128>}, {transform_indices = @transform_5, window_bounds = array<i64: 1, 2, 128>}, {transform_indices = @transform_6, window_bounds = array<i64: 128, 128>}]} {
    %c0_i32 = arith.constant 0 : i32
    %0 = arith.cmpi eq, %arg1, %c0_i32 : i32
    %1 = arith.extui %0 : i1 to i32
    %c0_i32_0 = arith.constant 0 : i32
    %2 = arith.cmpi ne, %1, %c0_i32_0 : i32
    scf.if %2 {
      %c0_19 = arith.constant 0 : index
      %c0_20 = arith.constant 0 : index
      %27 = vector.load %arg2[%c0_19, %c0_20] : memref<128x128xf32, #tpu.memory_space<vmem>>, vector<128x128xf32>
      %c0_21 = arith.constant 0 : index
      %c0_22 = arith.constant 0 : index
      %28 = vector.load %arg3[%c0_21, %c0_22] : memref<128x128xf32, #tpu.memory_space<vmem>>, vector<128x128xf32>
      %cst_23 = arith.constant dense<0.000000e+00> : vector<128x128xf32>
      %29 = tpu.matmul %27, %28, %cst_23 {dimension_numbers = #tpu.dot_dimension_numbers<[1], [0], [0], [1], [0, 0, 1, 1], [], []>} : vector<128x128xf32>, vector<128x128xf32>, vector<128x128xf32> -> vector<128x128xf32>
      %c0_24 = arith.constant 0 : index
      %c0_25 = arith.constant 0 : index
      %30 = vector.load %arg4[%c0_24, %c0_25] : memref<1x128xf32, #tpu.memory_space<vmem>>, vector<1x128xf32>
      %31 = vector.broadcast %30 : vector<1x128xf32> to vector<128x128xf32>
      %32 = arith.addf %29, %31 : vector<128x128xf32>
      %c0_26 = arith.constant 0 : index
      %c0_27 = arith.constant 0 : index
      %33 = vector.load %arg9[%c0_26, %c0_27] : memref<128x128xf32, #tpu.memory_space<vmem>>, vector<128x128xf32>
      tpu.vector_store %arg9[%c0_26, %c0_27], %32 {strides = array<i32>} : memref<128x128xf32, #tpu.memory_space<vmem>>, vector<128x128xf32>,
    } else {
    }
    %c0 = arith.constant 0 : index
    %c0_1 = arith.constant 0 : index
    %3 = vector.load %arg9[%c0, %c0_1] : memref<128x128xf32, #tpu.memory_space<vmem>>, vector<128x128xf32>
    %c0_2 = arith.constant 0 : index
    %c0_3 = arith.constant 0 : index
    %c0_4 = arith.constant 0 : index
    %4 = vector.load %arg7[%c0_2, %c0_3, %c0_4] : memref<1x2x128xf32, #tpu.memory_space<vmem>>, vector<1x1x128xf32>
    %5 = vector.shape_cast %4 : vector<1x1x128xf32> to vector<1x128xf32>
    %c0_5 = arith.constant 0 : index
    %c1 = arith.constant 1 : index
    %c0_6 = arith.constant 0 : index
    %6 = vector.load %arg7[%c0_5, %c1, %c0_6] : memref<1x2x128xf32, #tpu.memory_space<vmem>>, vector<1x1x128xf32>
    %7 = vector.shape_cast %6 : vector<1x1x128xf32> to vector<1x128xf32>
    %c0_7 = arith.constant 0 : index
    %c0_8 = arith.constant 0 : index
    %c0_9 = arith.constant 0 : index
    %8 = vector.load %arg5[%c0_7, %c0_8, %c0_9] : memref<1x128x128xf32, #tpu.memory_space<vmem>>, vector<1x128x128xf32>
    %9 = vector.shape_cast %8 : vector<1x128x128xf32> to vector<128x128xf32>
    %cst = arith.constant dense<0.000000e+00> : vector<128x128xf32>
    %10 = tpu.matmul %3, %9, %cst {dimension_numbers = #tpu.dot_dimension_numbers<[1], [0], [0], [1], [0, 0, 1, 1], [], []>} : vector<128x128xf32>, vector<128x128xf32>, vector<128x128xf32> -> vector<128x128xf32>
    %11 = vector.broadcast %5 : vector<1x128xf32> to vector<128x128xf32>
    %12 = arith.addf %10, %11 : vector<128x128xf32>
    %cst_10 = arith.constant 0.000000e+00 : f32
    %13 = vector.broadcast %cst_10 : f32 to vector<128x128xf32>
    %14 = arith.maximumf %12, %13 : vector<128x128xf32>
    %c0_11 = arith.constant 0 : index
    %c0_12 = arith.constant 0 : index
    %c0_13 = arith.constant 0 : index
    %15 = vector.load %arg6[%c0_11, %c0_12, %c0_13] : memref<1x128x128xf32, #tpu.memory_space<vmem>>, vector<1x128x128xf32>
    %16 = vector.shape_cast %15 : vector<1x128x128xf32> to vector<128x128xf32>
    %cst_14 = arith.constant dense<0.000000e+00> : vector<128x128xf32>
    %17 = tpu.matmul %14, %16, %cst_14 {dimension_numbers = #tpu.dot_dimension_numbers<[1], [0], [0], [1], [0, 0, 1, 1], [], []>} : vector<128x128xf32>, vector<128x128xf32>, vector<128x128xf32> -> vector<128x128xf32>
    %18 = vector.broadcast %7 : vector<1x128xf32> to vector<128x128xf32>
    %19 = arith.addf %17, %18 : vector<128x128xf32>
    %20 = arith.addf %19, %3 : vector<128x128xf32>
    %cst_15 = arith.constant 0.000000e+00 : f32
    %21 = vector.broadcast %cst_15 : f32 to vector<128x128xf32>
    %22 = arith.maximumf %20, %21 : vector<128x128xf32>
    %c0_16 = arith.constant 0 : index
    %c0_17 = arith.constant 0 : index
    %23 = vector.load %arg9[%c0_16, %c0_17] : memref<128x128xf32, #tpu.memory_space<vmem>>, vector<128x128xf32>
    tpu.vector_store %arg9[%c0_16, %c0_17], %22 {strides = array<i32>} : memref<128x128xf32, #tpu.memory_space<vmem>>, vector<128x128xf32>,
    %c2_i32 = arith.constant 2 : i32
    %24 = arith.cmpi eq, %arg1, %c2_i32 : i32
    %25 = arith.extui %24 : i1 to i32
    %c0_i32_18 = arith.constant 0 : i32
    %26 = arith.cmpi ne, %25, %c0_i32_18 : i32
    scf.if %26 {
      %c0_19 = arith.constant 0 : index
      %c0_20 = arith.constant 0 : index
      %27 = vector.load %arg8[%c0_19, %c0_20] : memref<128x128xf32, #tpu.memory_space<vmem>>, vector<128x128xf32>
      tpu.vector_store %arg8[%c0_19, %c0_20], %22 {strides = array<i32>} : memref<128x128xf32, #tpu.memory_space<vmem>>, vector<128x128xf32>,
    } else {
    }
    return
  }
  func.func @transform_0(%arg0: i32, %arg1: i32) -> (i32, i32) {
    %c0_i32 = arith.constant 0 : i32
    %c0_i32_0 = arith.constant 0 : i32
    return %arg0, %c0_i32 : i32, i32
  }
  func.func @transform_1(%arg0: i32, %arg1: i32) -> (i32, i32) {
    %c0_i32 = arith.constant 0 : i32
    %c0_i32_0 = arith.constant 0 : i32
    %c0_i32_1 = arith.constant 0 : i32
    return %c0_i32, %c0_i32_0 : i32, i32
  }
  func.func @transform_2(%arg0: i32, %arg1: i32) -> (i32, i32) {
    %c0_i32 = arith.constant 0 : i32
    %c0_i32_0 = arith.constant 0 : i32
    %c0_i32_1 = arith.constant 0 : i32
    return %c0_i32, %c0_i32_0 : i32, i32
  }
  func.func @transform_3(%arg0: i32, %arg1: i32) -> (i32, i32, i32) {
    %c0_i32 = arith.constant 0 : i32
    %c0_i32_0 = arith.constant 0 : i32
    %c0_i32_1 = arith.constant 0 : i32
    return %arg1, %c0_i32, %c0_i32_0 : i32, i32, i32
  }
  func.func @transform_4(%arg0: i32, %arg1: i32) -> (i32, i32, i32) {
    %c0_i32 = arith.constant 0 : i32
    %c0_i32_0 = arith.constant 0 : i32
    %c0_i32_1 = arith.constant 0 : i32
    return %arg1, %c0_i32, %c0_i32_0 : i32, i32, i32
  }
  func.func @transform_5(%arg0: i32, %arg1: i32) -> (i32, i32, i32) {
    %c0_i32 = arith.constant 0 : i32
    %c0_i32_0 = arith.constant 0 : i32
    %c0_i32_1 = arith.constant 0 : i32
    return %arg1, %c0_i32, %c0_i32_0 : i32, i32, i32
  }
  func.func @transform_6(%arg0: i32, %arg1: i32) -> (i32, i32) {
    %c0_i32 = arith.constant 0 : i32
    %c0_i32_0 = arith.constant 0 : i32
    return %arg0, %c0_i32 : i32, i32
  }
}

</mosaic_0001>

<llo_original>
// kernel: tpu_custom_call.1
$region0: #{tpu_custom_call.1}
  #allocation0 [shape = 'u32[]', space=smem, size = 0x4, offset = 0x4, fixed_abs, tag = 'smem constant byte address 0x4 - core index']
  #allocation1 [shape = 'u32[144,128]{1,0:T(1,128)}', space=vmem, size = 0x12000, scoped, tag = 'internal scratch']
  #allocation2 [shape = 'f32[128,128]{1,0:T(8,128)}', space=vmem, size = 0x10000, scoped, tag = 'scratch operand']
  %s0 = inlined_call_operand.hbm [shape: f32[128,128], index: 0, kind: input, shape index: {}]
  %s1 = inlined_call_operand.hbm [shape: f32[128,128], index: 1, kind: input, shape index: {}]
  %s2 = inlined_call_operand.vmem [shape: f32[1,128], index: 2, kind: input, shape index: {}]
  %s3 = inlined_call_operand.hbm [shape: f32[3,128,128], index: 3, kind: input, shape index: {}]
  %s4 = inlined_call_operand.hbm [shape: f32[3,128,128], index: 4, kind: input, shape index: {}]
  %s5 = inlined_call_operand.vmem [shape: f32[3,2,128], index: 5, kind: input, shape index: {}]
  %s6 = inlined_call_operand.hbm [shape: f32[128,128], index: 6, kind: output, shape index: {}]
  %s7 = sld [smem:[#allocation0]]
  $region81: #{tpu_custom_call.1} parent=0
    _
  %s9 = ssub.s32 1, %s7
  %s10 = scalar_select 0, %s9, %s7
  $region1: #{tpu_custom_call.1} parent=0
    #allocation3 [shape = 'u8[65536]{0}', space=vmem, size = 0x10000, scoped, tag = 'input window, operand 0, single buffered']
    #allocation4 [shape = 's32[2]{0}', space=sflag, size = 0x8, scoped, tag = 'scoped memory for tpu_custom_call.1']
    #allocation5 [shape = 's32[2]{0}', space=sflag, size = 0x8, scoped, tag = 'scoped memory for tpu_custom_call.1']
    #allocation6 [shape = 'u8[65536]{0}', space=vmem, size = 0x10000, scoped, tag = 'input window, operand 1, single buffered']
    #allocation7 [shape = 's32[1]{0}', space=sflag, size = 0x4, scoped, tag = 'scoped memory for tpu_custom_call.1']
    #allocation8 [shape = 'u8[131072]{0}', space=vmem, size = 0x20000, scoped, tag = 'input window, operand 3']
    #allocation9 [shape = 'u8[131072]{0}', space=vmem, size = 0x20000, scoped, tag = 'input window, operand 4']
    #allocation10 [shape = 'u8[65536]{0}', space=vmem, size = 0x10000, scoped, tag = 'output window, operand 0, single buffered']
    %11 = vsyncpa [#allocation4], 0
    %12 = vsyncpa [#allocation7], 0
    %13 = vsyncpa [#allocation5], 0
    loop: start=0, step=1, limit=5
    $region2: #{tpu_custom_call.1} parent=1 // loop_pre_header
      _
    $region3: #{tpu_custom_call.1} parent=1 // loop_header
      %s15 = sphi 0, %s19
      %p16 = scmp.ge.s32.totalorder %s15, 5
      %s22 = sphi 0, %s34
      %s23 = sphi 0, %s30
      %s24 = sphi 0, %s22
      %s25 = sphi 0, %s23
      %s26 = sphi 0, %s24
      %s27 = sphi 0, %s25
      %s37 = sphi 0, %s39
      %s40 = sphi 0, %s37
      %s41 = sphi 0, %s40
      %s57 = sphi 0, %s41
      %s61 = sphi 0, %s61
      %s63 = sphi 0, %s61
      %s64 = sphi 0, %s63
      %s78 = sphi 0, %s64
      %s82 = sphi 0, %s82
      %s84 = sphi 0, %s82
      %s85 = sphi 0, %s84
      %s99 = sphi 0, %s85
      %s105 = sphi 0, %s107
      %s108 = sphi 0, %s105
      %s109 = sphi 0, %s108
      %s125 = sphi 0, %s109
      %s131 = sphi 0, %s133
      %s134 = sphi 0, %s131
      %s135 = sphi 0, %s134
      %s151 = sphi 0, %s135
      %s157 = sphi 0, %s159
      %s160 = sphi 0, %s157
      %s161 = sphi 0, %s160
      %s177 = sphi 0, %s161
      %s183 = sphi 0, %s185
      %s186 = sphi 0, %s183
      %s187 = sphi 0, %s186
      %s203 = sphi 0, %s187
    $region4: #{tpu_custom_call.1} parent=1 // loop_header_branch
      %18 = sbr.rel (%p16) target = $region8
    $region5: #{tpu_custom_call.1} parent=1 // loop_body
      %s20 = ssub.s32 %s15, 1
      %s21 = ssub.s32 %s15, 2
      %s28 = sadd.s32 1, %s23
      %p29 = scmp.ge.s32.totalorder %s28, 3
      %s30 = scalar_select %p29, 0, %s28
      %s31 = sadd.s32 1, %s22
      %s32 = scalar_select %p29, %s31, %s22
      %p33 = scmp.ge.s32.totalorder %s32, 1
      %s34 = scalar_select %p33, 0, %s32
      %s35 = ssub.s32 %s22, %s34
      %p36 = scmp.eq.s32.totalorder %s35, 0
      %s38 = sadd.s32 %s37, 1
      %s39 = scalar_select %p36, %s37, %s38
      %p42 = pneg %p36
      %p43 = scmp.eq.s32.totalorder %s15, 2
      %p44 = por %p42, %p43
      %p45 = scmp.ne.s32.totalorder %s37, %s40
      %p46 = scmp.eq.s32.totalorder %s15, 0
      %p47 = por %p45, %p46
      %p48 = scmp.ne.s32.totalorder %s37, %s40
      %p49 = scmp.eq.s32.totalorder %s20, 2
      %p50 = por %p48, %p49
      %p51 = scmp.ne.s32.totalorder %s40, %s41
      %p52 = scmp.eq.s32.totalorder %s20, 0
      %p53 = por %p51, %p52
      %p54 = scmp.ne.s32.totalorder %s40, %s41
      %p55 = scmp.eq.s32.totalorder %s21, 2
      %p56 = por %p54, %p55
      %p58 = scmp.ne.s32.totalorder %s41, %s57
      %p59 = scmp.eq.s32.totalorder %s21, 0
      %p60 = por %p58, %p59
      %s62 = sadd.s32 %s61, 1
      %p65 = scmp.eq.s32.totalorder %s15, 2
      %p66 = scmp.ne.s32.totalorder %s61, %s63
      %p67 = scmp.eq.s32.totalorder %s15, 0
      %p68 = por %p66, %p67
      %p69 = scmp.ne.s32.totalorder %s61, %s63
      %p70 = scmp.eq.s32.totalorder %s20, 2
      %p71 = por %p69, %p70
      %p72 = scmp.ne.s32.totalorder %s63, %s64
      %p73 = scmp.eq.s32.totalorder %s20, 0
      %p74 = por %p72, %p73
      %p75 = scmp.ne.s32.totalorder %s63, %s64
      %p76 = scmp.eq.s32.totalorder %s21, 2
      %p77 = por %p75, %p76
      %p79 = scmp.ne.s32.totalorder %s64, %s78
      %p80 = scmp.eq.s32.totalorder %s21, 0
      %p81 = por %p79, %p80
      %s83 = sadd.s32 %s82, 1
      %p86 = scmp.eq.s32.totalorder %s15, 2
      %p87 = scmp.ne.s32.totalorder %s82, %s84
      %p88 = scmp.eq.s32.totalorder %s15, 0
      %p89 = por %p87, %p88
      %p90 = scmp.ne.s32.totalorder %s82, %s84
      %p91 = scmp.eq.s32.totalorder %s20, 2
      %p92 = por %p90, %p91
      %p93 = scmp.ne.s32.totalorder %s84, %s85
      %p94 = scmp.eq.s32.totalorder %s20, 0
      %p95 = por %p93, %p94
      %p96 = scmp.ne.s32.totalorder %s84, %s85
      %p97 = scmp.eq.s32.totalorder %s21, 2
      %p98 = por %p96, %p97
      %p100 = scmp.ne.s32.totalorder %s85, %s99
      %p101 = scmp.eq.s32.totalorder %s21, 0
      %p102 = por %p100, %p101
      %s103 = ssub.s32 %s23, %s30
      %p104 = scmp.eq.s32.totalorder %s103, 0
      %s106 = sadd.s32 %s105, 1
      %s107 = scalar_select %p104, %s105, %s106
      %p110 = pneg %p104
      %p111 = scmp.eq.s32.totalorder %s15, 2
      %p112 = por %p110, %p111
      %p113 = scmp.ne.s32.totalorder %s105, %s108
      %p114 = scmp.eq.s32.totalorder %s15, 0
      %p115 = por %p113, %p114
      %p116 = scmp.ne.s32.totalorder %s105, %s108
      %p117 = scmp.eq.s32.totalorder %s20, 2
      %p118 = por %p116, %p117
      %p119 = scmp.ne.s32.totalorder %s108, %s109
      %p120 = scmp.eq.s32.totalorder %s20, 0
      %p121 = por %p119, %p120
      %p122 = scmp.ne.s32.totalorder %s108, %s109
      %p123 = scmp.eq.s32.totalorder %s21, 2
      %p124 = por %p122, %p123
      %p126 = scmp.ne.s32.totalorder %s109, %s125
      %p127 = scmp.eq.s32.totalorder %s21, 0
      %p128 = por %p126, %p127
      %s129 = ssub.s32 %s23, %s30
      %p130 = scmp.eq.s32.totalorder %s129, 0
      %s132 = sadd.s32 %s131, 1
      %s133 = scalar_select %p130, %s131, %s132
      %p136 = pneg %p130
      %p137 = scmp.eq.s32.totalorder %s15, 2
      %p138 = por %p136, %p137
      %p139 = scmp.ne.s32.totalorder %s131, %s134
      %p140 = scmp.eq.s32.totalorder %s15, 0
      %p141 = por %p139, %p140
      %p142 = scmp.ne.s32.totalorder %s131, %s134
      %p143 = scmp.eq.s32.totalorder %s20, 2
      %p144 = por %p142, %p143
      %p145 = scmp.ne.s32.totalorder %s134, %s135
      %p146 = scmp.eq.s32.totalorder %s20, 0
      %p147 = por %p145, %p146
      %p148 = scmp.ne.s32.totalorder %s134, %s135
      %p149 = scmp.eq.s32.totalorder %s21, 2
      %p150 = por %p148, %p149
      %p152 = scmp.ne.s32.totalorder %s135, %s151
      %p153 = scmp.eq.s32.totalorder %s21, 0
      %p154 = por %p152, %p153
      %s155 = ssub.s32 %s23, %s30
      %p156 = scmp.eq.s32.totalorder %s155, 0
      %s158 = sadd.s32 %s157, 1
      %s159 = scalar_select %p156, %s157, %s158
      %p162 = pneg %p156
      %p163 = scmp.eq.s32.totalorder %s15, 2
      %p164 = por %p162, %p163
      %p165 = scmp.ne.s32.totalorder %s157, %s160
      %p166 = scmp.eq.s32.totalorder %s15, 0
      %p167 = por %p165, %p166
      %p168 = scmp.ne.s32.totalorder %s157, %s160
      %p169 = scmp.eq.s32.totalorder %s20, 2
      %p170 = por %p168, %p169
      %p171 = scmp.ne.s32.totalorder %s160, %s161
      %p172 = scmp.eq.s32.totalorder %s20, 0
      %p173 = por %p171, %p172
      %p174 = scmp.ne.s32.totalorder %s160, %s161
      %p175 = scmp.eq.s32.totalorder %s21, 2
      %p176 = por %p174, %p175
      %p178 = scmp.ne.s32.totalorder %s161, %s177
      %p179 = scmp.eq.s32.totalorder %s21, 0
      %p180 = por %p178, %p179
      %s181 = ssub.s32 %s22, %s34
      %p182 = scmp.eq.s32.totalorder %s181, 0
      %s184 = sadd.s32 %s183, 1
      %s185 = scalar_select %p182, %s183, %s184
      %p188 = pneg %p182
      %p189 = scmp.eq.s32.totalorder %s15, 2
      %p190 = por %p188, %p189
      %p191 = scmp.ne.s32.totalorder %s183, %s186
      %p192 = scmp.eq.s32.totalorder %s15, 0
      %p193 = por %p191, %p192
      %p194 = scmp.ne.s32.totalorder %s183, %s186
      %p195 = scmp.eq.s32.totalorder %s20, 2
      %p196 = por %p194, %p195
      %p197 = scmp.ne.s32.totalorder %s186, %s187
      %p198 = scmp.eq.s32.totalorder %s20, 0
      %p199 = por %p197, %p198
      %p200 = scmp.ne.s32.totalorder %s186, %s187
      %p201 = scmp.eq.s32.totalorder %s21, 2
      %p202 = por %p200, %p201
      %p204 = scmp.ne.s32.totalorder %s187, %s203
      %p205 = scmp.eq.s32.totalorder %s21, 0
      %p206 = por %p204, %p205
      %p207 = scmp.le.s32.totalorder 1, %s15
      %p208 = scmp.lt.s32.totalorder %s15, 4
      %p209 = pnand %p207, %p208
      %p210 = pneg %p209
      // Predicated region
      $region9: #{tpu_custom_call.1} parent=5 // pred_check
        _
      $region10: #{tpu_custom_call.1} parent=5 // pred_check_branch
        %212 = sbr.rel (%p209) target = $region12
      $region11: #{tpu_custom_call.1} parent=5 // pred_region
        %s213 = ssub.s32 %s15, 1
        // Predicated region
        $region13: #{tpu_custom_call.1} parent=11 // pred_check
          %p214 = pneg %p53
        $region14: #{tpu_custom_call.1} parent=11 // pred_check_branch
          %216 = sbr.rel (%p214) target = $region16
        $region15: #{tpu_custom_call.1} parent=11 // pred_region
          %s217 = smul.u32 16, %s24
          %s219 = ssub.s32 2048, 2048
          %220 = vsyncadd [#allocation4], %s219
          %s221 = smul.addr %s217, 128
          %s222 = scalar_lea.hbm %s0, %s221
          %s223 = sshll.u32 [#allocation3], 4
          %s224 = int_to_ptr.vmem [resolvable:$true] %s223
          %229 = dma.hbm_to_vmem [thread:$0]  %s222, 2048, %s224, [#allocation4], 128, 128, 8
        $region16: #{tpu_custom_call.1} parent=11 // pred_fallthru
          _
        // Predicated region
        $region17: #{tpu_custom_call.1} parent=11 // pred_check
          %p230 = pneg %p74
        $region18: #{tpu_custom_call.1} parent=11 // pred_check_branch
          %232 = sbr.rel (%p230) target = $region20
        $region19: #{tpu_custom_call.1} parent=11 // pred_region
          %s234 = ssub.s32 2048, 2048
          %235 = vsyncadd [#allocation7], %s234
          %s236 = sshll.u32 [#allocation6], 4
          %s237 = int_to_ptr.vmem [resolvable:$true] %s236
          %242 = dma.hbm_to_vmem [thread:$0]  %s1, 2048, %s237, [#allocation7], 128, 128, 8
        $region20: #{tpu_custom_call.1} parent=11 // pred_fallthru
          _
        // Predicated region
        $region21: #{tpu_custom_call.1} parent=11 // pred_check
          %p243 = pneg %p95
        $region22: #{tpu_custom_call.1} parent=11 // pred_check_branch
          %245 = sbr.rel (%p243) target = $region24
        $region23: #{tpu_custom_call.1} parent=11 // pred_region
          _
        $region24: #{tpu_custom_call.1} parent=11 // pred_fallthru
          _
      $region12: #{tpu_custom_call.1} parent=5 // pred_fallthru
        _
      %p246 = scmp.lt.s32.totalorder %s15, 3
      // Predicated region
      $region25: #{tpu_custom_call.1} parent=5 // pred_check
        %p247 = pneg %p246
      $region26: #{tpu_custom_call.1} parent=5 // pred_check_branch
        %249 = sbr.rel (%p247) target = $region28
      $region27: #{tpu_custom_call.1} parent=5 // pred_region
        // Predicated region
        $region29: #{tpu_custom_call.1} parent=27 // pred_check
          %p250 = pneg %p115
        $region30: #{tpu_custom_call.1} parent=27 // pred_check_branch
          %252 = sbr.rel (%p250) target = $region32
        $region31: #{tpu_custom_call.1} parent=27 // pred_region
          %s253 = sand.u32 %s15, 1
          %s254 = scalar_lea.sflag [#allocation4], %s253
          %s255 = sand.u32 %s105, 1
          %s256 = smul.addr %s255, 128
          %s257 = scalar_lea.vmem [#allocation8], %s256
          %s259 = ssub.s32 2048, 2048
          %260 = vsyncadd %s254, %s259
          %s261 = smul.addr %s23, 16
          %s262 = smul.addr %s261, 128
          %s263 = scalar_lea.hbm %s3, %s262
          %s264 = sshll.u32 %s257, 4
          %s265 = int_to_ptr.vmem [resolvable:$true] %s264
          %270 = dma.hbm_to_vmem [thread:$0]  %s263, 2048, %s265, %s254, 128, 128, 8
        $region32: #{tpu_custom_call.1} parent=27 // pred_fallthru
          _
        // Predicated region
        $region33: #{tpu_custom_call.1} parent=27 // pred_check
          %p271 = pneg %p141
        $region34: #{tpu_custom_call.1} parent=27 // pred_check_branch
          %273 = sbr.rel (%p271) target = $region36
        $region35: #{tpu_custom_call.1} parent=27 // pred_region
          %s274 = sand.u32 %s15, 1
          %s275 = scalar_lea.sflag [#allocation4], %s274
          %s276 = sand.u32 %s131, 1
          %s277 = smul.addr %s276, 128
          %s278 = scalar_lea.vmem [#allocation9], %s277
          %s280 = ssub.s32 2048, 2048
          %281 = vsyncadd %s275, %s280
          %s282 = smul.addr %s23, 16
          %s283 = smul.addr %s282, 128
          %s284 = scalar_lea.hbm %s4, %s283
          %s285 = sshll.u32 %s278, 4
          %s286 = int_to_ptr.vmem [resolvable:$true] %s285
          %291 = dma.hbm_to_vmem [thread:$0]  %s284, 2048, %s286, %s275, 128, 128, 8
        $region36: #{tpu_custom_call.1} parent=27 // pred_fallthru
          _
        // Predicated region
        $region37: #{tpu_custom_call.1} parent=27 // pred_check
          %p292 = pneg %p167
        $region38: #{tpu_custom_call.1} parent=27 // pred_check_branch
          %294 = sbr.rel (%p292) target = $region40
        $region39: #{tpu_custom_call.1} parent=27 // pred_region
          %p295 = scmp.lt.s32.totalorder %s23, 2
          %s296 = scalar_select %p295, %s23, 2
          %s297 = smul.addr %s296, 2
          %s298 = scalar_lea.vmem %s5, %s297
        $region40: #{tpu_custom_call.1} parent=27 // pred_fallthru
          _
      $region28: #{tpu_custom_call.1} parent=5 // pred_fallthru
        _
      %p299 = scmp.le.s32.totalorder 1, %s15
      %p300 = scmp.lt.s32.totalorder %s15, 4
      %p301 = pnand %p299, %p300
      %p302 = pneg %p301
      // Predicated region
      $region41: #{tpu_custom_call.1} parent=5 // pred_check
        _
      $region42: #{tpu_custom_call.1} parent=5 // pred_check_branch
        %304 = sbr.rel (%p301) target = $region44
      $region43: #{tpu_custom_call.1} parent=5 // pred_region
        %s305 = ssub.s32 %s15, 1
        // Predicated region
        $region45: #{tpu_custom_call.1} parent=43 // pred_check
          %p306 = pneg %p53
        $region46: #{tpu_custom_call.1} parent=43 // pred_check_branch
          %308 = sbr.rel (%p306) target = $region48
        $region47: #{tpu_custom_call.1} parent=43 // pred_region
          %309 = dma.done [#allocation4], 2048
        $region48: #{tpu_custom_call.1} parent=43 // pred_fallthru
          _
        // Predicated region
        $region49: #{tpu_custom_call.1} parent=43 // pred_check
          %p310 = pneg %p74
        $region50: #{tpu_custom_call.1} parent=43 // pred_check_branch
          %312 = sbr.rel (%p310) target = $region52
        $region51: #{tpu_custom_call.1} parent=43 // pred_region
          %313 = dma.done [#allocation7], 2048
        $region52: #{tpu_custom_call.1} parent=43 // pred_fallthru
          _
        %s314 = sand.u32 %s20, 1
        %s315 = scalar_lea.sflag [#allocation4], %s314
        %s316 = sand.u32 %s108, 1
        %s317 = smul.addr %s316, 128
        %s318 = scalar_lea.vmem [#allocation8], %s317
        // Predicated region
        $region53: #{tpu_custom_call.1} parent=43 // pred_check
          %p319 = pneg %p121
        $region54: #{tpu_custom_call.1} parent=43 // pred_check_branch
          %321 = sbr.rel (%p319) target = $region56
        $region55: #{tpu_custom_call.1} parent=43 // pred_region
          %322 = dma.done %s315, 2048
        $region56: #{tpu_custom_call.1} parent=43 // pred_fallthru
          _
        %s323 = sand.u32 %s20, 1
        %s324 = scalar_lea.sflag [#allocation4], %s323
        %s325 = sand.u32 %s134, 1
        %s326 = smul.addr %s325, 128
        %s327 = scalar_lea.vmem [#allocation9], %s326
        // Predicated region
        $region57: #{tpu_custom_call.1} parent=43 // pred_check
          %p328 = pneg %p147
        $region58: #{tpu_custom_call.1} parent=43 // pred_check_branch
          %330 = sbr.rel (%p328) target = $region60
        $region59: #{tpu_custom_call.1} parent=43 // pred_region
          %331 = dma.done %s324, 2048
        $region60: #{tpu_custom_call.1} parent=43 // pred_fallthru
          _
        %p332 = pneg %p53
        %p333 = pneg %p50
        %p334 = pneg %p74
        %p335 = pneg %p71
        %p336 = pneg %p95
        %p337 = pneg %p92
        %s338 = sand.u32 %s20, 1
        %s339 = scalar_lea.sflag [#allocation4], %s338
        %s340 = sand.u32 %s108, 1
        %s341 = smul.addr %s340, 128
        %s342 = scalar_lea.vmem [#allocation8], %s341
        %p343 = pneg %p121
        %p344 = pneg %p118
        %s345 = sand.u32 %s20, 1
        %s346 = scalar_lea.sflag [#allocation4], %s345
        %s347 = sand.u32 %s134, 1
        %s348 = smul.addr %s347, 128
        %s349 = scalar_lea.vmem [#allocation9], %s348
        %p350 = pneg %p147
        %p351 = pneg %p144
        %p352 = scmp.lt.s32.totalorder %s25, 2
        %s353 = scalar_select %p352, %s25, 2
        %s354 = smul.addr %s353, 2
        %s355 = scalar_lea.vmem %s5, %s354
        %p356 = pneg %p173
        %p357 = pneg %p170
        %p358 = pneg %p199
        %p359 = pneg %p196
        %s360 = smul.u32 16, %s24
        %p361 = scmp.lt.s32.totalorder %s25, 2
        %s362 = scalar_select %p361, %s25, 2
        %s363 = smul.addr %s362, 2
        %s364 = scalar_lea.vmem %s5, %s363
        %s365 = smul.u32 16, %s24
        %p366 = scmp.eq.s32.totalorder %s25, 0
        // Predicated region
        $region61: #{tpu_custom_call.1} parent=43 // pred_check
          %p367 = pneg %p366
        $region62: #{tpu_custom_call.1} parent=43 // pred_check_branch
          %369 = sbr.rel (%p367) target = $region64
        $region63: #{tpu_custom_call.1} parent=43 // pred_region
          %v370 = vld [vmem:[#allocation3] sm:$0xff]
          %v371 = vld [vmem:[#allocation3 + $0x8] sm:$0xff]
          %v372 = vld [vmem:[#allocation3 + $0x10] sm:$0xff]
          %v373 = vld [vmem:[#allocation3 + $0x18] sm:$0xff]
          %v374 = vld [vmem:[#allocation3 + $0x20] sm:$0xff]
          %v375 = vld [vmem:[#allocation3 + $0x28] sm:$0xff]
          %v376 = vld [vmem:[#allocation3 + $0x30] sm:$0xff]
          %v377 = vld [vmem:[#allocation3 + $0x38] sm:$0xff]
          %v378 = vld [vmem:[#allocation3 + $0x40] sm:$0xff]
          %v379 = vld [vmem:[#allocation3 + $0x48] sm:$0xff]
          %v380 = vld [vmem:[#allocation3 + $0x50] sm:$0xff]
          %v381 = vld [vmem:[#allocation3 + $0x58] sm:$0xff]
          %v382 = vld [vmem:[#allocation3 + $0x60] sm:$0xff]
          %v383 = vld [vmem:[#allocation3 + $0x68] sm:$0xff]
          %v384 = vld [vmem:[#allocation3 + $0x70] sm:$0xff]
          %v385 = vld [vmem:[#allocation3 + $0x78] sm:$0xff]
          %v386 = vld [vmem:[#allocation6] sm:$0xff]
          %v387 = vld [vmem:[#allocation6 + $0x8] sm:$0xff]
          %v388 = vld [vmem:[#allocation6 + $0x10] sm:$0xff]
          %v389 = vld [vmem:[#allocation6 + $0x18] sm:$0xff]
          %v390 = vld [vmem:[#allocation6 + $0x20] sm:$0xff]
          %v391 = vld [vmem:[#allocation6 + $0x28] sm:$0xff]
          %v392 = vld [vmem:[#allocation6 + $0x30] sm:$0xff]
          %v393 = vld [vmem:[#allocation6 + $0x38] sm:$0xff]
          %v394 = vld [vmem:[#allocation6 + $0x40] sm:$0xff]
          %v395 = vld [vmem:[#allocation6 + $0x48] sm:$0xff]
          %v396 = vld [vmem:[#allocation6 + $0x50] sm:$0xff]
          %v397 = vld [vmem:[#allocation6 + $0x58] sm:$0xff]
          %v398 = vld [vmem:[#allocation6 + $0x60] sm:$0xff]
          %v399 = vld [vmem:[#allocation6 + $0x68] sm:$0xff]
          %v400 = vld [vmem:[#allocation6 + $0x70] sm:$0xff]
          %v401 = vld [vmem:[#allocation6 + $0x78] sm:$0xff]
          %v402 = vld [vmem:[%s2] sm:$0x1]
          %v404 = vlaneseq
          %v405 = vshrl.u32 %v404, 7
          %v406 = vsub.s32 0, %v405
          %v407 = vrot.slane %v402, %v406
          %409 = vmatprep.subr.mxu0 0.0
          %410 = vmatpush1.msra.mxu0 %v386
          %411 = vmatprep.subr.mxu0 0.0
          %412 = vmatpush1.msra.mxu0 %v387
          %413 = vmatprep.subr.mxu0 0.0
          %414 = vmatpush1.msra.mxu0 %v388
          %415 = vmatprep.subr.mxu0 0.0
          %416 = vmatpush1.msra.mxu0 %v389
          %417 = vmatprep.subr.mxu0 0.0
          %418 = vmatpush1.msra.mxu0 %v390
          %419 = vmatprep.subr.mxu0 0.0
          %420 = vmatpush1.msra.mxu0 %v391
          %421 = vmatprep.subr.mxu0 0.0
          %422 = vmatpush1.msra.mxu0 %v392
          %423 = vmatprep.subr.mxu0 0.0
          %424 = vmatpush1.msra.mxu0 %v393
          %425 = vmatprep.subr.mxu0 0.0
          %426 = vmatpush1.msra.mxu0 %v394
          %427 = vmatprep.subr.mxu0 0.0
          %428 = vmatpush1.msra.mxu0 %v395
          %429 = vmatprep.subr.mxu0 0.0
          %430 = vmatpush1.msra.mxu0 %v396
          %431 = vmatprep.subr.mxu0 0.0
          %432 = vmatpush1.msra.mxu0 %v397
          %433 = vmatprep.subr.mxu0 0.0
          %434 = vmatpush1.msra.mxu0 %v398
          %435 = vmatprep.subr.mxu0 0.0
          %436 = vmatpush1.msra.mxu0 %v399
          %437 = vmatprep.subr.mxu0 0.0
          %438 = vmatpush1.msra.mxu0 %v400
          %439 = vmatprep.subr.mxu0 0.0
          %440 = vmatpush1.msra.mxu0 %v401
          %441 = vmatprep.subr.mxu0 0.0
          %442 = vmatpush1.msra.mxu0 0.0
          %443 = vmatprep.subr.mxu0 0.0
          %444 = vmatpush1.msra.mxu0 0.0
          %445 = vmatprep.subr.mxu0 0.0
          %446 = vmatpush1.msra.mxu0 0.0
          %447 = vmatprep.subr.mxu0 0.0
          %448 = vmatpush1.msra.mxu0 0.0
          %449 = vmatprep.subr.mxu0 0.0
          %450 = vmatpush1.msra.mxu0 0.0
          %451 = vmatprep.subr.mxu0 0.0
          %452 = vmatpush1.msra.mxu0 0.0
          %453 = vmatprep.subr.mxu0 0.0
          %454 = vmatpush1.msra.mxu0 0.0
          %455 = vmatprep.subr.mxu0 0.0
          %456 = vmatpush1.msra.mxu0 0.0
          %457 = vmatprep.subr.mxu0 0.0
          %458 = vmatpush1.msra.mxu0 0.0
          %459 = vmatprep.subr.mxu0 0.0
          %460 = vmatpush1.msra.mxu0 0.0
          %461 = vmatprep.subr.mxu0 0.0
          %462 = vmatpush1.msra.mxu0 0.0
          %463 = vmatprep.subr.mxu0 0.0
          %464 = vmatpush1.msra.mxu0 0.0
          %465 = vmatprep.subr.mxu0 0.0
          %466 = vmatpush1.msra.mxu0 0.0
          %467 = vmatprep.subr.mxu0 0.0
          %468 = vmatpush1.msra.mxu0 0.0
          %469 = vmatprep.subr.mxu0 0.0
          %470 = vmatpush1.msra.mxu0 0.0
          %471 = vmatprep.subr.mxu0 0.0
          %472 = vmatpush1.msra.mxu0 0.0
          %473 = vmatprep.mubr.f32.mxu0 0.0
          %474 = vmatmul.mubr.f32.gmra.mrb[0].mxu0 %v370
          %v475 = vpop.f32.mrb[0].mxu0
          %v476 = vadd.f32 %v407, %v475
          %v477 = vpop.f32.mrb[0].mxu0
          %478 = vmatprep.mubr.f32.mxu0 0.0
          %479 = vmatmul.mubr.f32.gmra.mrb[0].mxu0 %v371
          %v480 = vpop.f32.mrb[0].mxu0
          %v481 = vadd.f32 %v407, %v480
          %v482 = vpop.f32.mrb[0].mxu0
          %483 = vmatprep.mubr.f32.mxu0 0.0
          %484 = vmatmul.mubr.f32.gmra.mrb[0].mxu0 %v372
          %v485 = vpop.f32.mrb[0].mxu0
          %v486 = vadd.f32 %v407, %v485
          %v487 = vpop.f32.mrb[0].mxu0
          %488 = vmatprep.mubr.f32.mxu0 0.0
          %489 = vmatmul.mubr.f32.gmra.mrb[0].mxu0 %v373
          %v490 = vpop.f32.mrb[0].mxu0
          %v491 = vadd.f32 %v407, %v490
          %v492 = vpop.f32.mrb[0].mxu0
          %493 = vmatprep.mubr.f32.mxu0 0.0
          %494 = vmatmul.mubr.f32.gmra.mrb[0].mxu0 %v374
          %v495 = vpop.f32.mrb[0].mxu0
          %v496 = vadd.f32 %v407, %v495
          %v497 = vpop.f32.mrb[0].mxu0
          %498 = vmatprep.mubr.f32.mxu0 0.0
          %499 = vmatmul.mubr.f32.gmra.mrb[0].mxu0 %v375
          %v500 = vpop.f32.mrb[0].mxu0
          %v501 = vadd.f32 %v407, %v500
          %v502 = vpop.f32.mrb[0].mxu0
          %503 = vmatprep.mubr.f32.mxu0 0.0
          %504 = vmatmul.mubr.f32.gmra.mrb[0].mxu0 %v376
          %v505 = vpop.f32.mrb[0].mxu0
          %v506 = vadd.f32 %v407, %v505
          %v507 = vpop.f32.mrb[0].mxu0
          %508 = vmatprep.mubr.f32.mxu0 0.0
          %509 = vmatmul.mubr.f32.gmra.mrb[0].mxu0 %v377
          %v510 = vpop.f32.mrb[0].mxu0
          %v511 = vadd.f32 %v407, %v510
          %v512 = vpop.f32.mrb[0].mxu0
          %513 = vmatprep.mubr.f32.mxu0 0.0
          %514 = vmatmul.mubr.f32.gmra.mrb[0].mxu0 %v378
          %v515 = vpop.f32.mrb[0].mxu0
          %v516 = vadd.f32 %v407, %v515
          %v517 = vpop.f32.mrb[0].mxu0
          %518 = vmatprep.mubr.f32.mxu0 0.0
          %519 = vmatmul.mubr.f32.gmra.mrb[0].mxu0 %v379
          %v520 = vpop.f32.mrb[0].mxu0
          %v521 = vadd.f32 %v407, %v520
          %v522 = vpop.f32.mrb[0].mxu0
          %523 = vmatprep.mubr.f32.mxu0 0.0
          %524 = vmatmul.mubr.f32.gmra.mrb[0].mxu0 %v380
          %v525 = vpop.f32.mrb[0].mxu0
          %v526 = vadd.f32 %v407, %v525
          %v527 = vpop.f32.mrb[0].mxu0
          %528 = vmatprep.mubr.f32.mxu0 0.0
          %529 = vmatmul.mubr.f32.gmra.mrb[0].mxu0 %v381
          %v530 = vpop.f32.mrb[0].mxu0
          %v531 = vadd.f32 %v407, %v530
          %v532 = vpop.f32.mrb[0].mxu0
          %533 = vmatprep.mubr.f32.mxu0 0.0
          %534 = vmatmul.mubr.f32.gmra.mrb[0].mxu0 %v382
          %v535 = vpop.f32.mrb[0].mxu0
          %v536 = vadd.f32 %v407, %v535
          %v537 = vpop.f32.mrb[0].mxu0
          %538 = vmatprep.mubr.f32.mxu0 0.0
          %539 = vmatmul.mubr.f32.gmra.mrb[0].mxu0 %v383
          %v540 = vpop.f32.mrb[0].mxu0
          %v541 = vadd.f32 %v407, %v540
          %v542 = vpop.f32.mrb[0].mxu0
          %543 = vmatprep.mubr.f32.mxu0 0.0
          %544 = vmatmul.mubr.f32.gmra.mrb[0].mxu0 %v384
          %v545 = vpop.f32.mrb[0].mxu0
          %v546 = vadd.f32 %v407, %v545
          %v547 = vpop.f32.mrb[0].mxu0
          %548 = vmatprep.mubr.f32.mxu0 0.0
          %549 = vmatmul.mubr.f32.gmra.mrb[0].mxu0 %v385
          %v550 = vpop.f32.mrb[0].mxu0
          %v551 = vadd.f32 %v407, %v550
          %v552 = vpop.f32.mrb[0].mxu0
          %553 = vdwg.mxu0
          %554 = vst [vmem:[#allocation2] sm:$0xff] %v476
          %555 = vst [vmem:[#allocation2 + $0x8] sm:$0xff] %v481
          %556 = vst [vmem:[#allocation2 + $0x10] sm:$0xff] %v486
          %557 = vst [vmem:[#allocation2 + $0x18] sm:$0xff] %v491
          %558 = vst [vmem:[#allocation2 + $0x20] sm:$0xff] %v496
          %559 = vst [vmem:[#allocation2 + $0x28] sm:$0xff] %v501
          %560 = vst [vmem:[#allocation2 + $0x30] sm:$0xff] %v506
          %561 = vst [vmem:[#allocation2 + $0x38] sm:$0xff] %v511
          %562 = vst [vmem:[#allocation2 + $0x40] sm:$0xff] %v516
          %563 = vst [vmem:[#allocation2 + $0x48] sm:$0xff] %v521
          %564 = vst [vmem:[#allocation2 + $0x50] sm:$0xff] %v526
          %565 = vst [vmem:[#allocation2 + $0x58] sm:$0xff] %v531
          %566 = vst [vmem:[#allocation2 + $0x60] sm:$0xff] %v536
          %567 = vst [vmem:[#allocation2 + $0x68] sm:$0xff] %v541
          %568 = vst [vmem:[#allocation2 + $0x70] sm:$0xff] %v546
          %569 = vst [vmem:[#allocation2 + $0x78] sm:$0xff] %v551
        $region64: #{tpu_custom_call.1} parent=43 // pred_fallthru
          _
        %v570 = vld [vmem:[#allocation2] sm:$0xff]
        %v571 = vld [vmem:[#allocation2 + $0x8] sm:$0xff]
        %v572 = vld [vmem:[#allocation2 + $0x10] sm:$0xff]
        %v573 = vld [vmem:[#allocation2 + $0x18] sm:$0xff]
        %v574 = vld [vmem:[#allocation2 + $0x20] sm:$0xff]
        %v575 = vld [vmem:[#allocation2 + $0x28] sm:$0xff]
        %v576 = vld [vmem:[#allocation2 + $0x30] sm:$0xff]
        %v577 = vld [vmem:[#allocation2 + $0x38] sm:$0xff]
        %v578 = vld [vmem:[#allocation2 + $0x40] sm:$0xff]
        %v579 = vld [vmem:[#allocation2 + $0x48] sm:$0xff]
        %v580 = vld [vmem:[#allocation2 + $0x50] sm:$0xff]
        %v581 = vld [vmem:[#allocation2 + $0x58] sm:$0xff]
        %v582 = vld [vmem:[#allocation2 + $0x60] sm:$0xff]
        %v583 = vld [vmem:[#allocation2 + $0x68] sm:$0xff]
        %v584 = vld [vmem:[#allocation2 + $0x70] sm:$0xff]
        %v585 = vld [vmem:[#allocation2 + $0x78] sm:$0xff]
        %v586 = vld [vmem:[%s364] sm:$0x1]
        %v587 = vld [vmem:[%s364 + $0x1] sm:$0x1]
        %v588 = vld [vmem:[%s318] sm:$0xff]
        %v589 = vld [vmem:[%s318 + $0x8] sm:$0xff]
        %v590 = vld [vmem:[%s318 + $0x10] sm:$0xff]
        %v591 = vld [vmem:[%s318 + $0x18] sm:$0xff]
        %v592 = vld [vmem:[%s318 + $0x20] sm:$0xff]
        %v593 = vld [vmem:[%s318 + $0x28] sm:$0xff]
        %v594 = vld [vmem:[%s318 + $0x30] sm:$0xff]
        %v595 = vld [vmem:[%s318 + $0x38] sm:$0xff]
        %v596 = vld [vmem:[%s318 + $0x40] sm:$0xff]
        %v597 = vld [vmem:[%s318 + $0x48] sm:$0xff]
        %v598 = vld [vmem:[%s318 + $0x50] sm:$0xff]
        %v599 = vld [vmem:[%s318 + $0x58] sm:$0xff]
        %v600 = vld [vmem:[%s318 + $0x60] sm:$0xff]
        %v601 = vld [vmem:[%s318 + $0x68] sm:$0xff]
        %v602 = vld [vmem:[%s318 + $0x70] sm:$0xff]
        %v603 = vld [vmem:[%s318 + $0x78] sm:$0xff]
        %v604 = vlaneseq
        %v605 = vshrl.u32 %v604, 7
        %v606 = vsub.s32 0, %v605
        %v607 = vrot.slane %v586, %v606
        %608 = vmatprep.subr.mxu0 0.0
        %609 = vmatpush1.msra.mxu0 %v588
        %610 = vmatprep.subr.mxu0 0.0
        %611 = vmatpush1.msra.mxu0 %v589
        %612 = vmatprep.subr.mxu0 0.0
        %613 = vmatpush1.msra.mxu0 %v590
        %614 = vmatprep.subr.mxu0 0.0
        %615 = vmatpush1.msra.mxu0 %v591
        %616 = vmatprep.subr.mxu0 0.0
        %617 = vmatpush1.msra.mxu0 %v592
        %618 = vmatprep.subr.mxu0 0.0
        %619 = vmatpush1.msra.mxu0 %v593
        %620 = vmatprep.subr.mxu0 0.0
        %621 = vmatpush1.msra.mxu0 %v594
        %622 = vmatprep.subr.mxu0 0.0
        %623 = vmatpush1.msra.mxu0 %v595
        %624 = vmatprep.subr.mxu0 0.0
        %625 = vmatpush1.msra.mxu0 %v596
        %626 = vmatprep.subr.mxu0 0.0
        %627 = vmatpush1.msra.mxu0 %v597
        %628 = vmatprep.subr.mxu0 0.0
        %629 = vmatpush1.msra.mxu0 %v598
        %630 = vmatprep.subr.mxu0 0.0
        %631 = vmatpush1.msra.mxu0 %v599
        %632 = vmatprep.subr.mxu0 0.0
        %633 = vmatpush1.msra.mxu0 %v600
        %634 = vmatprep.subr.mxu0 0.0
        %635 = vmatpush1.msra.mxu0 %v601
        %636 = vmatprep.subr.mxu0 0.0
        %637 = vmatpush1.msra.mxu0 %v602
        %638 = vmatprep.subr.mxu0 0.0
        %639 = vmatpush1.msra.mxu0 %v603
        %640 = vmatprep.subr.mxu0 0.0
        %641 = vmatpush1.msra.mxu0 0.0
        %642 = vmatprep.subr.mxu0 0.0
        %643 = vmatpush1.msra.mxu0 0.0
        %644 = vmatprep.subr.mxu0 0.0
        %645 = vmatpush1.msra.mxu0 0.0
        %646 = vmatprep.subr.mxu0 0.0
        %647 = vmatpush1.msra.mxu0 0.0
        %648 = vmatprep.subr.mxu0 0.0
        %649 = vmatpush1.msra.mxu0 0.0
        %650 = vmatprep.subr.mxu0 0.0
        %651 = vmatpush1.msra.mxu0 0.0
        %652 = vmatprep.subr.mxu0 0.0
        %653 = vmatpush1.msra.mxu0 0.0
        %654 = vmatprep.subr.mxu0 0.0
        %655 = vmatpush1.msra.mxu0 0.0
        %656 = vmatprep.subr.mxu0 0.0
        %657 = vmatpush1.msra.mxu0 0.0
        %658 = vmatprep.subr.mxu0 0.0
        %659 = vmatpush1.msra.mxu0 0.0
        %660 = vmatprep.subr.mxu0 0.0
        %661 = vmatpush1.msra.mxu0 0.0
        %662 = vmatprep.subr.mxu0 0.0
        %663 = vmatpush1.msra.mxu0 0.0
        %664 = vmatprep.subr.mxu0 0.0
        %665 = vmatpush1.msra.mxu0 0.0
        %666 = vmatprep.subr.mxu0 0.0
        %667 = vmatpush1.msra.mxu0 0.0
        %668 = vmatprep.subr.mxu0 0.0
        %669 = vmatpush1.msra.mxu0 0.0
        %670 = vmatprep.subr.mxu0 0.0
        %671 = vmatpush1.msra.mxu0 0.0
        %672 = vmatprep.mubr.f32.mxu0 0.0
        %673 = vmatmul.mubr.f32.gmra.mrb[0].mxu0 %v570
        %v674 = vpop.f32.mrb[0].mxu0
        %v675 = vadd.f32 %v607, %v674
        %v676 = vpop.f32.mrb[0].mxu0
        %677 = vmatprep.mubr.f32.mxu0 0.0
        %678 = vmatmul.mubr.f32.gmra.mrb[0].mxu0 %v571
        %v679 = vpop.f32.mrb[0].mxu0
        %v680 = vadd.f32 %v607, %v679
        %v681 = vpop.f32.mrb[0].mxu0
        %682 = vmatprep.mubr.f32.mxu0 0.0
        %683 = vmatmul.mubr.f32.gmra.mrb[0].mxu0 %v572
        %v684 = vpop.f32.mrb[0].mxu0
        %v685 = vadd.f32 %v607, %v684
        %v686 = vpop.f32.mrb[0].mxu0
        %687 = vmatprep.mubr.f32.mxu0 0.0
        %688 = vmatmul.mubr.f32.gmra.mrb[0].mxu0 %v573
        %v689 = vpop.f32.mrb[0].mxu0
        %v690 = vadd.f32 %v607, %v689
        %v691 = vpop.f32.mrb[0].mxu0
        %692 = vmatprep.mubr.f32.mxu0 0.0
        %693 = vmatmul.mubr.f32.gmra.mrb[0].mxu0 %v574
        %v694 = vpop.f32.mrb[0].mxu0
        %v695 = vadd.f32 %v607, %v694
        %v696 = vpop.f32.mrb[0].mxu0
        %697 = vmatprep.mubr.f32.mxu0 0.0
        %698 = vmatmul.mubr.f32.gmra.mrb[0].mxu0 %v575
        %v699 = vpop.f32.mrb[0].mxu0
        %v700 = vadd.f32 %v607, %v699
        %v701 = vpop.f32.mrb[0].mxu0
        %702 = vmatprep.mubr.f32.mxu0 0.0
        %703 = vmatmul.mubr.f32.gmra.mrb[0].mxu0 %v576
        %v704 = vpop.f32.mrb[0].mxu0
        %v705 = vadd.f32 %v607, %v704
        %v706 = vpop.f32.mrb[0].mxu0
        %707 = vmatprep.mubr.f32.mxu0 0.0
        %708 = vmatmul.mubr.f32.gmra.mrb[0].mxu0 %v577
        %v709 = vpop.f32.mrb[0].mxu0
        %v710 = vadd.f32 %v607, %v709
        %v711 = vpop.f32.mrb[0].mxu0
        %712 = vmatprep.mubr.f32.mxu0 0.0
        %713 = vmatmul.mubr.f32.gmra.mrb[0].mxu0 %v578
        %v714 = vpop.f32.mrb[0].mxu0
        %v715 = vadd.f32 %v607, %v714
        %v716 = vpop.f32.mrb[0].mxu0
        %717 = vmatprep.mubr.f32.mxu0 0.0
        %718 = vmatmul.mubr.f32.gmra.mrb[0].mxu0 %v579
        %v719 = vpop.f32.mrb[0].mxu0
        %v720 = vadd.f32 %v607, %v719
        %v721 = vpop.f32.mrb[0].mxu0
        %722 = vmatprep.mubr.f32.mxu0 0.0
        %723 = vmatmul.mubr.f32.gmra.mrb[0].mxu0 %v580
        %v724 = vpop.f32.mrb[0].mxu0
        %v725 = vadd.f32 %v607, %v724
        %v726 = vpop.f32.mrb[0].mxu0
        %727 = vmatprep.mubr.f32.mxu0 0.0
        %728 = vmatmul.mubr.f32.gmra.mrb[0].mxu0 %v581
        %v729 = vpop.f32.mrb[0].mxu0
        %v730 = vadd.f32 %v607, %v729
        %v731 = vpop.f32.mrb[0].mxu0
        %732 = vmatprep.mubr.f32.mxu0 0.0
        %733 = vmatmul.mubr.f32.gmra.mrb[0].mxu0 %v582
        %v734 = vpop.f32.mrb[0].mxu0
        %v735 = vadd.f32 %v607, %v734
        %v736 = vpop.f32.mrb[0].mxu0
        %737 = vmatprep.mubr.f32.mxu0 0.0
        %738 = vmatmul.mubr.f32.gmra.mrb[0].mxu0 %v583
        %v739 = vpop.f32.mrb[0].mxu0
        %v740 = vadd.f32 %v607, %v739
        %v741 = vpop.f32.mrb[0].mxu0
        %742 = vmatprep.mubr.f32.mxu0 0.0
        %743 = vmatmul.mubr.f32.gmra.mrb[0].mxu0 %v584
        %v744 = vpop.f32.mrb[0].mxu0
        %v745 = vadd.f32 %v607, %v744
        %v746 = vpop.f32.mrb[0].mxu0
        %747 = vmatprep.mubr.f32.mxu0 0.0
        %748 = vmatmul.mubr.f32.gmra.mrb[0].mxu0 %v585
        %v749 = vpop.f32.mrb[0].mxu0
        %v750 = vadd.f32 %v607, %v749
        %v751 = vpop.f32.mrb[0].mxu0
        %752 = vdwg.mxu0
        %v753 = vmax.f32 %v675, 0.0
        %v754 = vmax.f32 %v680, 0.0
        %v755 = vmax.f32 %v685, 0.0
        %v756 = vmax.f32 %v690, 0.0
        %v757 = vmax.f32 %v695, 0.0
        %v758 = vmax.f32 %v700, 0.0
        %v759 = vmax.f32 %v705, 0.0
        %v760 = vmax.f32 %v710, 0.0
        %v761 = vmax.f32 %v715, 0.0
        %v762 = vmax.f32 %v720, 0.0
        %v763 = vmax.f32 %v725, 0.0
        %v764 = vmax.f32 %v730, 0.0
        %v765 = vmax.f32 %v735, 0.0
        %v766 = vmax.f32 %v740, 0.0
        %v767 = vmax.f32 %v745, 0.0
        %v768 = vmax.f32 %v750, 0.0
        %v769 = vld [vmem:[%s327] sm:$0xff]
        %v770 = vld [vmem:[%s327 + $0x8] sm:$0xff]
        %v771 = vld [vmem:[%s327 + $0x10] sm:$0xff]
        %v772 = vld [vmem:[%s327 + $0x18] sm:$0xff]
        %v773 = vld [vmem:[%s327 + $0x20] sm:$0xff]
        %v774 = vld [vmem:[%s327 + $0x28] sm:$0xff]
        %v775 = vld [vmem:[%s327 + $0x30] sm:$0xff]
        %v776 = vld [vmem:[%s327 + $0x38] sm:$0xff]
        %v777 = vld [vmem:[%s327 + $0x40] sm:$0xff]
        %v778 = vld [vmem:[%s327 + $0x48] sm:$0xff]
        %v779 = vld [vmem:[%s327 + $0x50] sm:$0xff]
        %v780 = vld [vmem:[%s327 + $0x58] sm:$0xff]
        %v781 = vld [vmem:[%s327 + $0x60] sm:$0xff]
        %v782 = vld [vmem:[%s327 + $0x68] sm:$0xff]
        %v783 = vld [vmem:[%s327 + $0x70] sm:$0xff]
        %v784 = vld [vmem:[%s327 + $0x78] sm:$0xff]
        %v785 = vlaneseq
        %v786 = vshrl.u32 %v785, 7
        %v787 = vsub.s32 0, %v786
        %v788 = vrot.slane %v587, %v787
        %789 = vmatprep.subr.mxu0 0.0
        %790 = vmatpush1.msra.mxu0 %v769
        %791 = vmatprep.subr.mxu0 0.0
        %792 = vmatpush1.msra.mxu0 %v770
        %793 = vmatprep.subr.mxu0 0.0
        %794 = vmatpush1.msra.mxu0 %v771
        %795 = vmatprep.subr.mxu0 0.0
        %796 = vmatpush1.msra.mxu0 %v772
        %797 = vmatprep.subr.mxu0 0.0
        %798 = vmatpush1.msra.mxu0 %v773
        %799 = vmatprep.subr.mxu0 0.0
        %800 = vmatpush1.msra.mxu0 %v774
        %801 = vmatprep.subr.mxu0 0.0
        %802 = vmatpush1.msra.mxu0 %v775
        %803 = vmatprep.subr.mxu0 0.0
        %804 = vmatpush1.msra.mxu0 %v776
        %805 = vmatprep.subr.mxu0 0.0
        %806 = vmatpush1.msra.mxu0 %v777
        %807 = vmatprep.subr.mxu0 0.0
        %808 = vmatpush1.msra.mxu0 %v778
        %809 = vmatprep.subr.mxu0 0.0
        %810 = vmatpush1.msra.mxu0 %v779
        %811 = vmatprep.subr.mxu0 0.0
        %812 = vmatpush1.msra.mxu0 %v780
        %813 = vmatprep.subr.mxu0 0.0
        %814 = vmatpush1.msra.mxu0 %v781
        %815 = vmatprep.subr.mxu0 0.0
        %816 = vmatpush1.msra.mxu0 %v782
        %817 = vmatprep.subr.mxu0 0.0
        %818 = vmatpush1.msra.mxu0 %v783
        %819 = vmatprep.subr.mxu0 0.0
        %820 = vmatpush1.msra.mxu0 %v784
        %821 = vmatprep.subr.mxu0 0.0
        %822 = vmatpush1.msra.mxu0 0.0
        %823 = vmatprep.subr.mxu0 0.0
        %824 = vmatpush1.msra.mxu0 0.0
        %825 = vmatprep.subr.mxu0 0.0
        %826 = vmatpush1.msra.mxu0 0.0
        %827 = vmatprep.subr.mxu0 0.0
        %828 = vmatpush1.msra.mxu0 0.0
        %829 = vmatprep.subr.mxu0 0.0
        %830 = vmatpush1.msra.mxu0 0.0
        %831 = vmatprep.subr.mxu0 0.0
        %832 = vmatpush1.msra.mxu0 0.0
        %833 = vmatprep.subr.mxu0 0.0
        %834 = vmatpush1.msra.mxu0 0.0
        %835 = vmatprep.subr.mxu0 0.0
        %836 = vmatpush1.msra.mxu0 0.0
        %837 = vmatprep.subr.mxu0 0.0
        %838 = vmatpush1.msra.mxu0 0.0
        %839 = vmatprep.subr.mxu0 0.0
        %840 = vmatpush1.msra.mxu0 0.0
        %841 = vmatprep.subr.mxu0 0.0
        %842 = vmatpush1.msra.mxu0 0.0
        %843 = vmatprep.subr.mxu0 0.0
        %844 = vmatpush1.msra.mxu0 0.0
        %845 = vmatprep.subr.mxu0 0.0
        %846 = vmatpush1.msra.mxu0 0.0
        %847 = vmatprep.subr.mxu0 0.0
        %848 = vmatpush1.msra.mxu0 0.0
        %849 = vmatprep.subr.mxu0 0.0
        %850 = vmatpush1.msra.mxu0 0.0
        %851 = vmatprep.subr.mxu0 0.0
        %852 = vmatpush1.msra.mxu0 0.0
        %853 = vmatprep.mubr.f32.mxu0 0.0
        %854 = vmatmul.mubr.f32.gmra.mrb[0].mxu0 %v753
        %v855 = vpop.f32.mrb[0].mxu0
        %v856 = vadd.f32 %v788, %v855
        %v857 = vpop.f32.mrb[0].mxu0
        %858 = vmatprep.mubr.f32.mxu0 0.0
        %859 = vmatmul.mubr.f32.gmra.mrb[0].mxu0 %v754
        %v860 = vpop.f32.mrb[0].mxu0
        %v861 = vadd.f32 %v788, %v860
        %v862 = vpop.f32.mrb[0].mxu0
        %863 = vmatprep.mubr.f32.mxu0 0.0
        %864 = vmatmul.mubr.f32.gmra.mrb[0].mxu0 %v755
        %v865 = vpop.f32.mrb[0].mxu0
        %v866 = vadd.f32 %v788, %v865
        %v867 = vpop.f32.mrb[0].mxu0
        %868 = vmatprep.mubr.f32.mxu0 0.0
        %869 = vmatmul.mubr.f32.gmra.mrb[0].mxu0 %v756
        %v870 = vpop.f32.mrb[0].mxu0
        %v871 = vadd.f32 %v788, %v870
        %v872 = vpop.f32.mrb[0].mxu0
        %873 = vmatprep.mubr.f32.mxu0 0.0
        %874 = vmatmul.mubr.f32.gmra.mrb[0].mxu0 %v757
        %v875 = vpop.f32.mrb[0].mxu0
        %v876 = vadd.f32 %v788, %v875
        %v877 = vpop.f32.mrb[0].mxu0
        %878 = vmatprep.mubr.f32.mxu0 0.0
        %879 = vmatmul.mubr.f32.gmra.mrb[0].mxu0 %v758
        %v880 = vpop.f32.mrb[0].mxu0
        %v881 = vadd.f32 %v788, %v880
        %v882 = vpop.f32.mrb[0].mxu0
        %883 = vmatprep.mubr.f32.mxu0 0.0
        %884 = vmatmul.mubr.f32.gmra.mrb[0].mxu0 %v759
        %v885 = vpop.f32.mrb[0].mxu0
        %v886 = vadd.f32 %v788, %v885
        %v887 = vpop.f32.mrb[0].mxu0
        %888 = vmatprep.mubr.f32.mxu0 0.0
        %889 = vmatmul.mubr.f32.gmra.mrb[0].mxu0 %v760
        %v890 = vpop.f32.mrb[0].mxu0
        %v891 = vadd.f32 %v788, %v890
        %v892 = vpop.f32.mrb[0].mxu0
        %893 = vmatprep.mubr.f32.mxu0 0.0
        %894 = vmatmul.mubr.f32.gmra.mrb[0].mxu0 %v761
        %v895 = vpop.f32.mrb[0].mxu0
        %v896 = vadd.f32 %v788, %v895
        %v897 = vpop.f32.mrb[0].mxu0
        %898 = vmatprep.mubr.f32.mxu0 0.0
        %899 = vmatmul.mubr.f32.gmra.mrb[0].mxu0 %v762
        %v900 = vpop.f32.mrb[0].mxu0
        %v901 = vadd.f32 %v788, %v900
        %v902 = vpop.f32.mrb[0].mxu0
        %903 = vmatprep.mubr.f32.mxu0 0.0
        %904 = vmatmul.mubr.f32.gmra.mrb[0].mxu0 %v763
        %v905 = vpop.f32.mrb[0].mxu0
        %v906 = vadd.f32 %v788, %v905
        %v907 = vpop.f32.mrb[0].mxu0
        %908 = vmatprep.mubr.f32.mxu0 0.0
        %909 = vmatmul.mubr.f32.gmra.mrb[0].mxu0 %v764
        %v910 = vpop.f32.mrb[0].mxu0
        %v911 = vadd.f32 %v788, %v910
        %v912 = vpop.f32.mrb[0].mxu0
        %913 = vmatprep.mubr.f32.mxu0 0.0
        %914 = vmatmul.mubr.f32.gmra.mrb[0].mxu0 %v765
        %v915 = vpop.f32.mrb[0].mxu0
        %v916 = vadd.f32 %v788, %v915
        %v917 = vpop.f32.mrb[0].mxu0
        %918 = vmatprep.mubr.f32.mxu0 0.0
        %919 = vmatmul.mubr.f32.gmra.mrb[0].mxu0 %v766
        %v920 = vpop.f32.mrb[0].mxu0
        %v921 = vadd.f32 %v788, %v920
        %v922 = vpop.f32.mrb[0].mxu0
        %923 = vmatprep.mubr.f32.mxu0 0.0
        %924 = vmatmul.mubr.f32.gmra.mrb[0].mxu0 %v767
        %v925 = vpop.f32.mrb[0].mxu0
        %v926 = vadd.f32 %v788, %v925
        %v927 = vpop.f32.mrb[0].mxu0
        %928 = vmatprep.mubr.f32.mxu0 0.0
        %929 = vmatmul.mubr.f32.gmra.mrb[0].mxu0 %v768
        %v930 = vpop.f32.mrb[0].mxu0
        %v931 = vadd.f32 %v788, %v930
        %v932 = vpop.f32.mrb[0].mxu0
        %933 = vdwg.mxu0
        %v934 = vadd.f32 %v856, %v570
        %v935 = vadd.f32 %v861, %v571
        %v936 = vadd.f32 %v866, %v572
        %v937 = vadd.f32 %v871, %v573
        %v938 = vadd.f32 %v876, %v574
        %v939 = vadd.f32 %v881, %v575
        %v940 = vadd.f32 %v886, %v576
        %v941 = vadd.f32 %v891, %v577
        %v942 = vadd.f32 %v896, %v578
        %v943 = vadd.f32 %v901, %v579
        %v944 = vadd.f32 %v906, %v580
        %v945 = vadd.f32 %v911, %v581
        %v946 = vadd.f32 %v916, %v582
        %v947 = vadd.f32 %v921, %v583
        %v948 = vadd.f32 %v926, %v584
        %v949 = vadd.f32 %v931, %v585
        %v950 = vmax.f32 %v934, 0.0
        %v951 = vmax.f32 %v935, 0.0
        %v952 = vmax.f32 %v936, 0.0
        %v953 = vmax.f32 %v937, 0.0
        %v954 = vmax.f32 %v938, 0.0
        %v955 = vmax.f32 %v939, 0.0
        %v956 = vmax.f32 %v940, 0.0
        %v957 = vmax.f32 %v941, 0.0
        %v958 = vmax.f32 %v942, 0.0
        %v959 = vmax.f32 %v943, 0.0
        %v960 = vmax.f32 %v944, 0.0
        %v961 = vmax.f32 %v945, 0.0
        %v962 = vmax.f32 %v946, 0.0
        %v963 = vmax.f32 %v947, 0.0
        %v964 = vmax.f32 %v948, 0.0
        %v965 = vmax.f32 %v949, 0.0
        %966 = vst [vmem:[#allocation2] sm:$0xff] %v950
        %967 = vst [vmem:[#allocation2 + $0x8] sm:$0xff] %v951
        %968 = vst [vmem:[#allocation2 + $0x10] sm:$0xff] %v952
        %969 = vst [vmem:[#allocation2 + $0x18] sm:$0xff] %v953
        %970 = vst [vmem:[#allocation2 + $0x20] sm:$0xff] %v954
        %971 = vst [vmem:[#allocation2 + $0x28] sm:$0xff] %v955
        %972 = vst [vmem:[#allocation2 + $0x30] sm:$0xff] %v956
        %973 = vst [vmem:[#allocation2 + $0x38] sm:$0xff] %v957
        %974 = vst [vmem:[#allocation2 + $0x40] sm:$0xff] %v958
        %975 = vst [vmem:[#allocation2 + $0x48] sm:$0xff] %v959
        %976 = vst [vmem:[#allocation2 + $0x50] sm:$0xff] %v960
        %977 = vst [vmem:[#allocation2 + $0x58] sm:$0xff] %v961
        %978 = vst [vmem:[#allocation2 + $0x60] sm:$0xff] %v962
        %979 = vst [vmem:[#allocation2 + $0x68] sm:$0xff] %v963
        %980 = vst [vmem:[#allocation2 + $0x70] sm:$0xff] %v964
        %981 = vst [vmem:[#allocation2 + $0x78] sm:$0xff] %v965
        %p982 = scmp.eq.s32.totalorder %s25, 2
        // Predicated region
        $region65: #{tpu_custom_call.1} parent=43 // pred_check
          %p983 = pneg %p982
        $region66: #{tpu_custom_call.1} parent=43 // pred_check_branch
          %985 = sbr.rel (%p983) target = $region68
        $region67: #{tpu_custom_call.1} parent=43 // pred_region
          %986 = vst [vmem:[#allocation10] sm:$0xff] %v950
          %987 = vst [vmem:[#allocation10 + $0x8] sm:$0xff] %v951
          %988 = vst [vmem:[#allocation10 + $0x10] sm:$0xff] %v952
          %989 = vst [vmem:[#allocation10 + $0x18] sm:$0xff] %v953
          %990 = vst [vmem:[#allocation10 + $0x20] sm:$0xff] %v954
          %991 = vst [vmem:[#allocation10 + $0x28] sm:$0xff] %v955
          %992 = vst [vmem:[#allocation10 + $0x30] sm:$0xff] %v956
          %993 = vst [vmem:[#allocation10 + $0x38] sm:$0xff] %v957
          %994 = vst [vmem:[#allocation10 + $0x40] sm:$0xff] %v958
          %995 = vst [vmem:[#allocation10 + $0x48] sm:$0xff] %v959
          %996 = vst [vmem:[#allocation10 + $0x50] sm:$0xff] %v960
          %997 = vst [vmem:[#allocation10 + $0x58] sm:$0xff] %v961
          %998 = vst [vmem:[#allocation10 + $0x60] sm:$0xff] %v962
          %999 = vst [vmem:[#allocation10 + $0x68] sm:$0xff] %v963
          %1000 = vst [vmem:[#allocation10 + $0x70] sm:$0xff] %v964
          %1001 = vst [vmem:[#allocation10 + $0x78] sm:$0xff] %v965
        $region68: #{tpu_custom_call.1} parent=43 // pred_fallthru
          _
        // Predicated region
        $region69: #{tpu_custom_call.1} parent=43 // pred_check
          %p1002 = pneg %p196
        $region70: #{tpu_custom_call.1} parent=43 // pred_check_branch
          %1004 = sbr.rel (%p1002) target = $region72
        $region71: #{tpu_custom_call.1} parent=43 // pred_region
          %s1005 = smul.u32 16, %s24
          %s1007 = ssub.s32 2048, 2048
          %1008 = vsyncadd [#allocation5], %s1007
          %s1009 = smul.addr %s1005, 128
          %s1010 = scalar_lea.hbm %s6, %s1009
          %s1011 = sshll.u32 [#allocation10], 4
          %s1012 = int_to_ptr.vmem [resolvable:$true] %s1011
          %1017 = dma.vmem_to_hbm [thread:$0]  %s1012, 2048, %s1010, [#allocation5], 128, 128, 8
        $region72: #{tpu_custom_call.1} parent=43 // pred_fallthru
          _
        // Predicated region
        $region73: #{tpu_custom_call.1} parent=43 // pred_check
          %p1018 = pneg %p196
        $region74: #{tpu_custom_call.1} parent=43 // pred_check_branch
          %1020 = sbr.rel (%p1018) target = $region76
        $region75: #{tpu_custom_call.1} parent=43 // pred_region
          %1021 = dma.done [#allocation5], 2048
        $region76: #{tpu_custom_call.1} parent=43 // pred_fallthru
          _
      $region44: #{tpu_custom_call.1} parent=5 // pred_fallthru
        _
      %p1022 = scmp.le.s32.totalorder 2, %s15
      // Predicated region
      $region77: #{tpu_custom_call.1} parent=5 // pred_check
        %p1023 = pneg %p1022
      $region78: #{tpu_custom_call.1} parent=5 // pred_check_branch
        %1025 = sbr.rel (%p1023) target = $region80
      $region79: #{tpu_custom_call.1} parent=5 // pred_region
        %s1026 = ssub.s32 %s15, 2
      $region80: #{tpu_custom_call.1} parent=5 // pred_fallthru
        _
    $region6: #{tpu_custom_call.1} parent=1 // loop_footer
      %s19 = sadd.s32 1, %s15
    $region7: #{tpu_custom_call.1} parent=1 // loop_footer_branch
      %14 = sbr.rel target = $region3
    $region8: #{tpu_custom_call.1} parent=1 // loop_exit
      _
    %1027 = vsyncpa [#allocation4], 1
    %s1028 = scalar_lea.sflag [#allocation4], 1
    %1029 = vsyncpa %s1028, 1
    %1030 = vsyncpa [#allocation7], 1
    %1031 = vsyncpa [#allocation5], 1
    %s1032 = scalar_lea.sflag [#allocation5], 1
    %1033 = vsyncpa %s1032, 1

</llo_original>
